<compile_context>
chip_gen: v6e
topology: v6e:2x2x1
jax: 0.10.0
libtpu: 0.0.40
codegen_flags: <defaults>
</compile_context>

<pallas_src>
import functools

import jax
import jax.numpy as jnp
from jax.experimental import pallas as pl
from jax.experimental.pallas import tpu as pltpu


def _vq_kernel(x_ref, wqt_ref, bq_ref, cb_ref, cbsq_ref,
               idx_ref, err_ref,
               h_sc, dmin_sc, idx_sc,
               *, n_valid, mxu_dtype):
    """Grid point (i, k): token tile i against codebook chunk k.

    Token axis is channel-major (tokens on the lane axis), so every
    intermediate, every reduction result and every output is lane-dense.
    """
    i = pl.program_id(0)
    k = pl.program_id(1)
    n_k = pl.num_programs(1)
    tm = x_ref.shape[1]
    kc = cb_ref.shape[0]

    # ---- first codebook chunk of a token tile: quant_conv + init carry ----
    @pl.when(k == 0)
    def _():
        x = x_ref[...].astype(mxu_dtype)                       # (Cz, tm)
        wqt = wqt_ref[...].astype(mxu_dtype)                   # (E, Cz)
        h = jnp.dot(wqt, x, preferred_element_type=jnp.float32) + bq_ref[...]
        h_sc[...] = h                                          # (E, tm) f32
        dmin_sc[...] = jnp.full(dmin_sc.shape, jnp.inf, jnp.float32)
        idx_sc[...] = jnp.zeros(idx_sc.shape, jnp.int32)

    # ---- distance to this chunk + running (dmin, argmin) carry ------------
    # d = ||e||^2 - 2 h.e  : the per-token ||h||^2 term is argmin-invariant
    # and is added back once at finalize for the commitment error.
    h = h_sc[...]                                              # (E, tm) f32
    cross = jnp.dot(cb_ref[...].astype(mxu_dtype), h.astype(mxu_dtype),
                    preferred_element_type=jnp.float32)        # (kc, tm)
    d = cbsq_ref[...] - 2.0 * cross                            # (kc, tm)
    dmin_c = jnp.min(d, axis=0, keepdims=True)                 # (1, tm)
    code = jax.lax.broadcasted_iota(jnp.int32, (kc, 1), 0)     # codes: sublanes
    cidx_c = jnp.min(jnp.where(d == dmin_c, code, kc),
                     axis=0, keepdims=True) + k * kc           # (1, tm)

    better = dmin_c < dmin_sc[...]       # strict '<' keeps first-min tie-break
    dmin_sc[...] = jnp.where(better, dmin_c, dmin_sc[...])
    idx_sc[...] = jnp.where(better, cidx_c, idx_sc[...])

    # ---- last chunk: emit indices + per-token commitment-error terms ------
    @pl.when(k == n_k - 1)
    def _():
        idx_ref[...] = idx_sc[...][None]                       # (1, 1, tm)
        hh = jnp.sum(h * h, axis=0, keepdims=True)             # (1, tm)
        err = dmin_sc[...] + hh                                # ||z_q - h||^2
        lane = jax.lax.broadcasted_iota(jnp.int32, (1, tm), 1)
        valid = (i * tm + lane) < n_valid
        err_ref[...] = jnp.where(valid, err, 0.0)[None]        # (1, 1, tm)


def _vmem_cap_bytes(default=64 * 2 ** 20):
    """Best-effort physical-VMEM query (v5e/v6e: 128 MiB, v7x: 64 MiB)."""
    try:
        return int(getattr(pltpu.get_tpu_info(), "vmem_capacity_bytes", default))
    except Exception:
        return default


def _const_spec(shape):
    """Full-array, grid-invariant operand; single-buffered when supported."""
    idx_map = lambda i, k: (0, 0)
    try:
        return pl.BlockSpec(shape, idx_map, pipeline_mode=pl.Buffered(1))
    except Exception:            # older pallas without pipeline_mode / Buffered
        return pl.BlockSpec(shape, idx_map)


def vq_gan_forward(x_nchw, params, *, tm=256, beta=0.25, k_chunk=512,
                   mxu_dtype=jnp.float32):
    """encode (quant_conv + quantize) then decode (post_quant_conv).

    Returns (dec, quant, emb_loss, indices), matching VQ_GanBase.encode +
    VQ_GanBase.decode for identity encoder/decoder.  Set
    mxu_dtype=jnp.bfloat16 for MXU peak on v5e/v6e/v7x (near-tie indices may
    differ from the f32 reference).  Pick tm so the token-tile count stays
    >= 2 (and preferably even) for v7x's 2 TensorCores.
    """
    # TODO(synk): encoder()/decoder() are abstract in VQ_GanBase; identity stubs.
    assert tm % 128 == 0, "tm must be a multiple of 128 (lane-dense tiles)"
    B, Cz, H, W = x_nchw.shape
    wq = params["wq"].astype(jnp.float32)          # (Cz, E)
    bq = params["bq"].astype(jnp.float32)          # (E,)
    cb = params["codebook"].astype(jnp.float32)    # (K, E)
    wp = params["wp"].astype(jnp.float32)          # (E, Cz)
    bp = params["bp"].astype(jnp.float32)          # (Cz,)
    E = wq.shape[1]
    K = cb.shape[0]

    # Grid-invariant codebook preprocessing, hoisted out of the kernel.
    kc = min(k_chunk, K)
    kc = ((kc + 7) // 8) * 8                        # sublane multiple
    n_k = -(-K // kc)
    k_tot = n_k * kc
    k_pad = k_tot - K
    cb_sq = jnp.sum(cb * cb, axis=-1)               # (K,)
    cb_pad = cb
    if k_pad:
        cb_pad = jnp.pad(cb, ((0, k_pad), (0, 0)))
        cb_sq = jnp.pad(cb_sq, (0, k_pad), constant_values=1e30)  # never wins
    cb_sq = cb_sq.reshape(k_tot, 1)

    # Tokens channel-major (Cz, B*H*W); token order matches NHWC flattening.
    tokens = jnp.transpose(x_nchw, (1, 0, 2, 3)).reshape(Cz, -1).astype(jnp.float32)
    n = tokens.shape[1]
    n_pad = (-n) % tm
    if n_pad:
        tokens = jnp.pad(tokens, ((0, 0), (0, n_pad)))
    n_tot = tokens.shape[1]
    num_tiles = n_tot // tm

    wqt = wq.T                                      # (E, Cz)
    bq_col = bq.reshape(E, 1)

    # VMEM budget: token tile + pipelined codebook chunks + scratch + headroom,
    # capped below physical capacity (v7x: 64 MiB total, leave compiler room).
    est = 4 * (2 * Cz * tm                          # token tile (double-buffered)
               + 2 * (kc * E + kc)                  # codebook chunk + ||e||^2
               + (E * Cz + E)                       # quant_conv weights (x1)
               + 2 * 2 * tm                         # idx + err output blocks
               + (E * tm + 2 * tm)                  # scratch (h, dmin, idx)
               + 4 * kc * tm)                       # in-flight distance tiles
    vmem_limit = int(min(_vmem_cap_bytes() * 3 // 4,
                         max(32 * 2 ** 20, 2 * est)))

    kernel = functools.partial(_vq_kernel, n_valid=n, mxu_dtype=mxu_dtype)

    idx_shape = jax.ShapeDtypeStruct((num_tiles, 1, tm), jnp.int32)
    err_shape = jax.ShapeDtypeStruct((num_tiles, 1, tm), jnp.float32)
    out_spec = lambda: pl.BlockSpec((1, 1, tm), lambda i, k: (i, 0, 0))

    idx_t, err_t = pl.pallas_call(
        kernel,
        out_shape=(idx_shape, err_shape),
        grid=(num_tiles, n_k),
        in_specs=[
            pl.BlockSpec((Cz, tm), lambda i, k: (0, i)),   # token tile
            _const_spec((E, Cz)),                          # quant_conv weight^T
            _const_spec((E, 1)),                           # quant_conv bias
            pl.BlockSpec((kc, E), lambda i, k: (k, 0)),    # codebook chunk
            pl.BlockSpec((kc, 1), lambda i, k: (k, 0)),    # ||e_k||^2 chunk
        ],
        out_specs=[out_spec(), out_spec()],
        scratch_shapes=[
            pltpu.VMEM((E, tm), jnp.float32),              # h (channel-major)
            pltpu.VMEM((1, tm), jnp.float32),              # running dmin
            pltpu.VMEM((1, tm), jnp.int32),                # running argmin
        ],
        compiler_params=pltpu.CompilerParams(
            dimension_semantics=("parallel", "arbitrary"),
            vmem_limit_bytes=vmem_limit,
        ),
    )(tokens, wqt, bq_col, cb_pad, cb_sq)

    indices = idx_t.reshape(-1)[:n]

    # VectorQuantizer2 (legacy): loss = beta*mean((zq.sg-z)^2) + mean((zq-z.sg)^2)
    # Forward value == (1 + beta) * mean((zq - h)^2); err_t holds per-token
    # ||zq - h||^2 (= dmin + ||h||^2) with padded tokens masked to zero.
    # NOTE: expansion form; fine here (codebook entries are small vs h).
    emb_loss = (1.0 + beta) * jnp.sum(err_t) / (n * E)

    # Codebook gather + post_quant_conv (1x1 conv) in the wrapper (perf review:
    # removes the mirrored gather matmul and a second resident codebook layout).
    zq = jnp.take(cb, indices, axis=0)                           # (n, E) f32
    dec_tok = jnp.dot(zq, wp, precision=jax.lax.Precision.HIGHEST) + bp

    quant = zq.reshape(B, H, W, E).transpose(0, 3, 1, 2)
    dec = dec_tok.reshape(B, H, W, Cz).transpose(0, 3, 1, 2)
    return dec, quant, emb_loss, indices


def _reference(x_nchw, params, beta=0.25):
    """Pure-JAX reference (PyTorch f32 semantics) of the same pipeline."""
    B, Cz, H, W = x_nchw.shape
    wq, bq, cb, wp, bp = (params["wq"], params["bq"], params["codebook"],
                          params["wp"], params["bp"])
    E = cb.shape[1]
    with jax.default_matmul_precision("highest"):
        z = jnp.transpose(x_nchw, (0, 2, 3, 1)).reshape(-1, Cz)
        h = z @ wq + bq
        d = (jnp.sum(h ** 2, 1, keepdims=True) + jnp.sum(cb ** 2, 1)[None]
             - 2.0 * (h @ cb.T))
        idx = jnp.argmin(d, axis=-1)
        zq = cb[idx]
        loss = (1.0 + beta) * jnp.mean((zq - h) ** 2)
        dec = zq @ wp + bp
    dec = dec.reshape(B, H, W, Cz).transpose(0, 3, 1, 2)
    quant = zq.reshape(B, H, W, E).transpose(0, 3, 1, 2)
    return dec, quant, loss, idx


if __name__ == "__main__":
    # Small shapes: n_embed=64, embed_dim=32, z_channels=4, spatial 16x16, batch 2
    B, Cz, H, W = 2, 4, 16, 16
    E, K = 32, 64

    key = jax.random.PRNGKey(0)
    k1, k2, k3, k4, k5, k6 = jax.random.split(key, 6)

    params = {
        # Conv2d(z_channels, embed_dim, 1) -> (Cz, E) matrix + (E,) bias
        "wq": jax.random.uniform(k1, (Cz, E), jnp.float32, -1.0, 1.0) / jnp.sqrt(Cz),
        "bq": jax.random.uniform(k2, (E,), jnp.float32, -0.1, 0.1),
        # nn.Embedding(n_embed, embed_dim) init: U(-1/n_embed, 1/n_embed)
        "codebook": jax.random.uniform(k3, (K, E), jnp.float32, -1.0 / K, 1.0 / K),
        # Conv2d(embed_dim, z_channels, 1) -> (E, Cz) matrix + (Cz,) bias
        "wp": jax.random.uniform(k4, (E, Cz), jnp.float32, -1.0, 1.0) / jnp.sqrt(E),
        "bp": jax.random.uniform(k5, (Cz,), jnp.float32, -0.1, 0.1),
    }
    x = jax.random.normal(k6, (B, Cz, H, W), jnp.float32)

    # f32 validation path (exact-index check vs the f32 reference).
    dec, quant, emb_loss, indices = vq_gan_forward(x, params)
    jax.block_until_ready((dec, quant, emb_loss, indices))

    dec_ref, quant_ref, loss_ref, idx_ref = _reference(x, params)
    assert dec.shape == (B, Cz, H, W)
    assert quant.shape == (B, E, H, W)
    assert indices.shape == (B * H * W,)
    assert jnp.all(indices == idx_ref.astype(jnp.int32))
    assert jnp.allclose(quant, quant_ref, atol=1e-5, rtol=1e-5)
    assert jnp.allclose(dec, dec_ref, atol=1e-4, rtol=1e-4)
    assert jnp.allclose(emb_loss, loss_ref, atol=1e-5, rtol=1e-4)

    # bf16 MXU path (production default on v5e/v6e/v7x); loose checks only,
    # since near-tie argmin flips are allowed in this mode.
    dec_bf, quant_bf, loss_bf, idx_bf = vq_gan_forward(
        x, params, mxu_dtype=jnp.bfloat16)
    jax.block_until_ready((dec_bf, quant_bf, loss_bf, idx_bf))
    assert dec_bf.shape == dec.shape and quant_bf.shape == quant.shape
    assert abs(float(loss_bf) - float(loss_ref)) <= 0.05 * float(loss_ref)

    print("KERNEL_OK")
</pallas_src>

<mosaic_0001>
module attributes {stable_mosaic.version = 11 : i64} {
  func.func @_vq_kernel(%arg0: i32, %arg1: i32, %arg2: memref<4x256xf32, #tpu.memory_space<vmem>>, %arg3: memref<32x4xf32, #tpu.memory_space<vmem>>, %arg4: memref<32x1xf32, #tpu.memory_space<vmem>>, %arg5: memref<64x32xf32, #tpu.memory_space<vmem>>, %arg6: memref<64x1xf32, #tpu.memory_space<vmem>>, %arg7: memref<1x1x256xi32, #tpu.memory_space<vmem>>, %arg8: memref<1x1x256xf32, #tpu.memory_space<vmem>>, %arg9: memref<32x256xf32, #tpu.memory_space<vmem>>, %arg10: memref<1x256xf32, #tpu.memory_space<vmem>>, %arg11: memref<1x256xi32, #tpu.memory_space<vmem>>) attributes {dimension_semantics = [#tpu.dimension_semantics<parallel>, #tpu.dimension_semantics<arbitrary>], iteration_bounds = array<i64: 2, 1>, scalar_prefetch = 0 : i64, scratch_operands = 3 : i64, tpu.core_type = #tpu.core_type<tc>, window_params = [{transform_indices = @transform_0, window_bounds = array<i64: 4, 256>}, {pipeline_mode = #tpu.pipeline_mode<synchronous>, transform_indices = @transform_1, window_bounds = array<i64: 32, 4>}, {pipeline_mode = #tpu.pipeline_mode<synchronous>, transform_indices = @transform_2, window_bounds = array<i64: 32, 1>}, {transform_indices = @transform_3, window_bounds = array<i64: 64, 32>}, {transform_indices = @transform_4, window_bounds = array<i64: 64, 1>}, {transform_indices = @transform_5, window_bounds = array<i64: 1, 1, 256>}, {transform_indices = @transform_6, window_bounds = array<i64: 1, 1, 256>}]} {
    %c0_i32 = arith.constant 0 : i32
    %0 = arith.cmpi eq, %arg1, %c0_i32 : i32
    %1 = arith.extui %0 : i1 to i32
    %c0_i32_0 = arith.constant 0 : i32
    %2 = arith.cmpi ne, %1, %c0_i32_0 : i32
    scf.if %2 {
      %c0_22 = arith.constant 0 : index
      %c0_23 = arith.constant 0 : index
      %36 = vector.load %arg2[%c0_22, %c0_23] : memref<4x256xf32, #tpu.memory_space<vmem>>, vector<4x256xf32>
      %c0_24 = arith.constant 0 : index
      %c0_25 = arith.constant 0 : index
      %37 = vector.load %arg3[%c0_24, %c0_25] : memref<32x4xf32, #tpu.memory_space<vmem>>, vector<32x4xf32>
      %cst_26 = arith.constant dense<0.000000e+00> : vector<32x256xf32>
      %38 = tpu.matmul %37, %36, %cst_26 {dimension_numbers = #tpu.dot_dimension_numbers<[1], [0], [0], [1], [0, 0, 1, 1], [], []>} : vector<32x4xf32>, vector<4x256xf32>, vector<32x256xf32> -> vector<32x256xf32>
      %c0_27 = arith.constant 0 : index
      %c0_28 = arith.constant 0 : index
      %39 = vector.load %arg4[%c0_27, %c0_28] : memref<32x1xf32, #tpu.memory_space<vmem>>, vector<32x1xf32>
      %40 = vector.broadcast %39 : vector<32x1xf32> to vector<32x256xf32>
      %41 = arith.addf %38, %40 : vector<32x256xf32>
      %c0_29 = arith.constant 0 : index
      %c0_30 = arith.constant 0 : index
      %42 = vector.load %arg9[%c0_29, %c0_30] : memref<32x256xf32, #tpu.memory_space<vmem>>, vector<32x256xf32>
      tpu.vector_store %arg9[%c0_29, %c0_30], %41 {strides = array<i32>} : memref<32x256xf32, #tpu.memory_space<vmem>>, vector<32x256xf32>,
      %cst_31 = arith.constant 0x7F800000 : f32
      %43 = vector.broadcast %cst_31 : f32 to vector<1x256xf32>
      %c0_32 = arith.constant 0 : index
      %c0_33 = arith.constant 0 : index
      %44 = vector.load %arg10[%c0_32, %c0_33] : memref<1x256xf32, #tpu.memory_space<vmem>>, vector<1x256xf32>
      tpu.vector_store %arg10[%c0_32, %c0_33], %43 {strides = array<i32>} : memref<1x256xf32, #tpu.memory_space<vmem>>, vector<1x256xf32>,
      %c0_i32_34 = arith.constant 0 : i32
      %45 = vector.broadcast %c0_i32_34 : i32 to vector<1x256xi32>
      %c0_35 = arith.constant 0 : index
      %c0_36 = arith.constant 0 : index
      %46 = vector.load %arg11[%c0_35, %c0_36] : memref<1x256xi32, #tpu.memory_space<vmem>>, vector<1x256xi32>
      tpu.vector_store %arg11[%c0_35, %c0_36], %45 {strides = array<i32>} : memref<1x256xi32, #tpu.memory_space<vmem>>, vector<1x256xi32>,
    } else {
    }
    %c0 = arith.constant 0 : index
    %c0_1 = arith.constant 0 : index
    %3 = vector.load %arg9[%c0, %c0_1] : memref<32x256xf32, #tpu.memory_space<vmem>>, vector<32x256xf32>
    %c0_2 = arith.constant 0 : index
    %c0_3 = arith.constant 0 : index
    %4 = vector.load %arg5[%c0_2, %c0_3] : memref<64x32xf32, #tpu.memory_space<vmem>>, vector<64x32xf32>
    %cst = arith.constant dense<0.000000e+00> : vector<64x256xf32>
    %5 = tpu.matmul %4, %3, %cst {dimension_numbers = #tpu.dot_dimension_numbers<[1], [0], [0], [1], [0, 0, 1, 1], [], []>} : vector<64x32xf32>, vector<32x256xf32>, vector<64x256xf32> -> vector<64x256xf32>
    %c0_4 = arith.constant 0 : index
    %c0_5 = arith.constant 0 : index
    %6 = vector.load %arg6[%c0_4, %c0_5] : memref<64x1xf32, #tpu.memory_space<vmem>>, vector<64x1xf32>
    %cst_6 = arith.constant 2.000000e+00 : f32
    %7 = vector.broadcast %cst_6 : f32 to vector<64x256xf32>
    %8 = arith.mulf %7, %5 : vector<64x256xf32>
    %9 = vector.broadcast %6 : vector<64x1xf32> to vector<64x256xf32>
    %10 = arith.subf %9, %8 : vector<64x256xf32>
    %cst_7 = arith.constant dense<0x7F800000> : vector<256xf32>
    %11 = vector.multi_reduction <minimumf>, %10, %cst_7 [0] : vector<64x256xf32> to vector<256xf32>
    %12 = vector.shape_cast %11 : vector<256xf32> to vector<1x256xf32>
    %13 = tpu.iota {dimensions = array<i32: 0>} : vector<64x1xi32>
    %14 = vector.broadcast %12 : vector<1x256xf32> to vector<64x256xf32>
    %15 = arith.cmpf oeq, %10, %14 : vector<64x256xf32>
    %c64_i32 = arith.constant 64 : i32
    %16 = vector.shape_cast %13 : vector<64x1xi32> to vector<64x1xi32>
    %17 = vector.broadcast %16 : vector<64x1xi32> to vector<64x256xi32>
    %18 = vector.broadcast %c64_i32 : i32 to vector<64x256xi32>
    %19 = arith.select %15, %17, %18 : vector<64x256xi1>, vector<64x256xi32>
    %cst_8 = arith.constant dense<2147483647> : vector<256xi32>
    %20 = vector.multi_reduction <minsi>, %19, %cst_8 [0] : vector<64x256xi32> to vector<256xi32>
    %21 = vector.shape_cast %20 : vector<256xi32> to vector<1x256xi32>
    %c64_i32_9 = arith.constant 64 : i32
    %22 = arith.muli %arg1, %c64_i32_9 : i32
    %23 = vector.broadcast %22 : i32 to vector<1x256xi32>
    %24 = arith.addi %21, %23 : vector<1x256xi32>
    %c0_10 = arith.constant 0 : index
    %c0_11 = arith.constant 0 : index
    %25 = vector.load %arg10[%c0_10, %c0_11] : memref<1x256xf32, #tpu.memory_space<vmem>>, vector<1x256xf32>
    %26 = arith.cmpf olt, %12, %25 : vector<1x256xf32>
    %c0_12 = arith.constant 0 : index
    %c0_13 = arith.constant 0 : index
    %27 = vector.load %arg10[%c0_12, %c0_13] : memref<1x256xf32, #tpu.memory_space<vmem>>, vector<1x256xf32>
    %28 = arith.select %26, %12, %27 : vector<1x256xi1>, vector<1x256xf32>
    %c0_14 = arith.constant 0 : index
    %c0_15 = arith.constant 0 : index
    %29 = vector.load %arg10[%c0_14, %c0_15] : memref<1x256xf32, #tpu.memory_space<vmem>>, vector<1x256xf32>
    tpu.vector_store %arg10[%c0_14, %c0_15], %28 {strides = array<i32>} : memref<1x256xf32, #tpu.memory_space<vmem>>, vector<1x256xf32>,
    %c0_16 = arith.constant 0 : index
    %c0_17 = arith.constant 0 : index
    %30 = vector.load %arg11[%c0_16, %c0_17] : memref<1x256xi32, #tpu.memory_space<vmem>>, vector<1x256xi32>
    %31 = arith.select %26, %24, %30 : vector<1x256xi1>, vector<1x256xi32>
    %c0_18 = arith.constant 0 : index
    %c0_19 = arith.constant 0 : index
    %32 = vector.load %arg11[%c0_18, %c0_19] : memref<1x256xi32, #tpu.memory_space<vmem>>, vector<1x256xi32>
    tpu.vector_store %arg11[%c0_18, %c0_19], %31 {strides = array<i32>} : memref<1x256xi32, #tpu.memory_space<vmem>>, vector<1x256xi32>,
    %c0_i32_20 = arith.constant 0 : i32
    %33 = arith.cmpi eq, %arg1, %c0_i32_20 : i32
    %34 = arith.extui %33 : i1 to i32
    %c0_i32_21 = arith.constant 0 : i32
    %35 = arith.cmpi ne, %34, %c0_i32_21 : i32
    scf.if %35 {
      %c0_22 = arith.constant 0 : index
      %c0_23 = arith.constant 0 : index
      %36 = vector.load %arg11[%c0_22, %c0_23] : memref<1x256xi32, #tpu.memory_space<vmem>>, vector<1x256xi32>
      %37 = vector.shape_cast %36 : vector<1x256xi32> to vector<1x1x256xi32>
      %c0_24 = arith.constant 0 : index
      %c0_25 = arith.constant 0 : index
      %c0_26 = arith.constant 0 : index
      %38 = vector.load %arg7[%c0_24, %c0_25, %c0_26] : memref<1x1x256xi32, #tpu.memory_space<vmem>>, vector<1x1x256xi32>
      tpu.vector_store %arg7[%c0_24, %c0_25, %c0_26], %37 {strides = array<i32>} : memref<1x1x256xi32, #tpu.memory_space<vmem>>, vector<1x1x256xi32>,
      %39 = arith.mulf %3, %3 : vector<32x256xf32>
      %cst_27 = arith.constant dense<0.000000e+00> : vector<256xf32>
      %40 = vector.multi_reduction <add>, %39, %cst_27 [0] : vector<32x256xf32> to vector<256xf32>
      %41 = vector.shape_cast %40 : vector<256xf32> to vector<1x256xf32>
      %c0_28 = arith.constant 0 : index
      %c0_29 = arith.constant 0 : index
      %42 = vector.load %arg10[%c0_28, %c0_29] : memref<1x256xf32, #tpu.memory_space<vmem>>, vector<1x256xf32>
      %43 = arith.addf %42, %41 : vector<1x256xf32>
      %44 = tpu.iota {dimensions = array<i32: 1>} : vector<1x256xi32>
      %c256_i32 = arith.constant 256 : i32
      %45 = arith.muli %arg0, %c256_i32 : i32
      %46 = vector.broadcast %45 : i32 to vector<1x256xi32>
      %47 = arith.addi %46, %44 : vector<1x256xi32>
      %c512_i32 = arith.constant 512 : i32
      %48 = vector.broadcast %c512_i32 : i32 to vector<1x256xi32>
      %49 = arith.cmpi slt, %47, %48 : vector<1x256xi32>
      %cst_30 = arith.constant 0.000000e+00 : f32
      %50 = vector.broadcast %cst_30 : f32 to vector<1x256xf32>
      %51 = arith.select %49, %43, %50 : vector<1x256xi1>, vector<1x256xf32>
      %52 = vector.shape_cast %51 : vector<1x256xf32> to vector<1x1x256xf32>
      %c0_31 = arith.constant 0 : index
      %c0_32 = arith.constant 0 : index
      %c0_33 = arith.constant 0 : index
      %53 = vector.load %arg8[%c0_31, %c0_32, %c0_33] : memref<1x1x256xf32, #tpu.memory_space<vmem>>, vector<1x1x256xf32>
      tpu.vector_store %arg8[%c0_31, %c0_32, %c0_33], %52 {strides = array<i32>} : memref<1x1x256xf32, #tpu.memory_space<vmem>>, vector<1x1x256xf32>,
    } else {
    }
    return
  }
  func.func @transform_0(%arg0: i32, %arg1: i32) -> (i32, i32) {
    %c0_i32 = arith.constant 0 : i32
    %c0_i32_0 = arith.constant 0 : i32
    return %c0_i32, %arg0 : i32, i32
  }
  func.func @transform_1(%arg0: i32, %arg1: i32) -> (i32, i32) {
    %c0_i32 = arith.constant 0 : i32
    %c0_i32_0 = arith.constant 0 : i32
    %c0_i32_1 = arith.constant 0 : i32
    return %c0_i32, %c0_i32_0 : i32, i32
  }
  func.func @transform_2(%arg0: i32, %arg1: i32) -> (i32, i32) {
    %c0_i32 = arith.constant 0 : i32
    %c0_i32_0 = arith.constant 0 : i32
    %c0_i32_1 = arith.constant 0 : i32
    return %c0_i32, %c0_i32_0 : i32, i32
  }
  func.func @transform_3(%arg0: i32, %arg1: i32) -> (i32, i32) {
    %c0_i32 = arith.constant 0 : i32
    %c0_i32_0 = arith.constant 0 : i32
    return %arg1, %c0_i32 : i32, i32
  }
  func.func @transform_4(%arg0: i32, %arg1: i32) -> (i32, i32) {
    %c0_i32 = arith.constant 0 : i32
    %c0_i32_0 = arith.constant 0 : i32
    return %arg1, %c0_i32 : i32, i32
  }
  func.func @transform_5(%arg0: i32, %arg1: i32) -> (i32, i32, i32) {
    %c0_i32 = arith.constant 0 : i32
    %c0_i32_0 = arith.constant 0 : i32
    %c0_i32_1 = arith.constant 0 : i32
    return %arg0, %c0_i32, %c0_i32_0 : i32, i32, i32
  }
  func.func @transform_6(%arg0: i32, %arg1: i32) -> (i32, i32, i32) {
    %c0_i32 = arith.constant 0 : i32
    %c0_i32_0 = arith.constant 0 : i32
    %c0_i32_1 = arith.constant 0 : i32
    return %arg0, %c0_i32, %c0_i32_0 : i32, i32, i32
  }
}

</mosaic_0001>

<llo_original>
// kernel: tpu_custom_call.1
$region0: #{tpu_custom_call.1}
  #allocation0 [shape = 'u32[]', space=smem, size = 0x4, offset = 0x4, fixed_abs, tag = 'smem constant byte address 0x4 - core index']
  #allocation1 [shape = 'u32[144,128]{1,0:T(1,128)}', space=vmem, size = 0x12000, scoped, tag = 'internal scratch']
  #allocation2 [shape = 'f32[32,256]{1,0:T(8,128)}', space=vmem, size = 0x8000, scoped, tag = 'scratch operand']
  #allocation3 [shape = 'f32[1,256]{1,0:T(1,128)}', space=vmem, size = 0x400, scoped, tag = 'scratch operand']
  #allocation4 [shape = 's32[1,256]{1,0:T(1,128)}', space=vmem, size = 0x400, scoped, tag = 'scratch operand']
  %s0 = inlined_call_operand.vmem [shape: f32[4,512], index: 0, kind: input, shape index: {}]
  %s1 = inlined_call_operand.vmem [shape: f32[32,4], index: 1, kind: input, shape index: {}]
  %s2 = inlined_call_operand.vmem [shape: f32[32,1], index: 2, kind: input, shape index: {}]
  %s3 = inlined_call_operand.vmem [shape: f32[64,32], index: 3, kind: input, shape index: {}]
  %s4 = inlined_call_operand.vmem [shape: f32[64,1], index: 4, kind: input, shape index: {}]
  %s5 = inlined_call_operand.hbm [shape: s32[2,1,256], index: 5, kind: output, shape index: {0}]
  %s6 = inlined_call_operand.hbm [shape: f32[2,1,256], index: 6, kind: output, shape index: {1}]
  %7 = xla_tuple %s5, %s6
  %s8 = sld [smem:[#allocation0]]
  $region69: #{tpu_custom_call.1} parent=0
    _
  %s10 = ssub.s32 1, %s8
  %s11 = scalar_select 0, %s10, %s8
  $region1: #{tpu_custom_call.1} parent=0
    #allocation5 [shape = 'u8[2048]{0}', space=vmem, size = 0x800, scoped, tag = 'output window, operand 0']
    #allocation6 [shape = 's32[2]{0}', space=sflag, size = 0x8, scoped, tag = 'scoped memory for tpu_custom_call.1']
    #allocation7 [shape = 'u8[2048]{0}', space=vmem, size = 0x800, scoped, tag = 'output window, operand 1']
    #allocation8 [shape = 's32[2]{0}', space=sflag, size = 0x8, scoped, tag = 'scoped memory for tpu_custom_call.1']
    %12 = vsyncpa [#allocation6], 0
    %s13 = scalar_lea.sflag [#allocation6], 1
    %14 = vsyncpa %s13, 0
    %15 = vsyncpa [#allocation8], 0
    %s16 = scalar_lea.sflag [#allocation8], 1
    %17 = vsyncpa %s16, 0
    loop: start=0, step=1, limit=4
    $region2: #{tpu_custom_call.1} parent=1 // loop_pre_header
      _
    $region3: #{tpu_custom_call.1} parent=1 // loop_header
      %s19 = sphi 0, %s23
      %p20 = scmp.ge.s32.totalorder %s19, 4
      %s26 = sphi 0, %s38
      %s27 = sphi 0, %s34
      %s28 = sphi 0, %s26
      %s29 = sphi 0, %s27
      %s30 = sphi 0, %s28
      %s31 = sphi 0, %s29
      %s41 = sphi 0, %s43
      %s44 = sphi 0, %s41
      %s45 = sphi 0, %s44
      %s61 = sphi 0, %s45
      %s65 = sphi 0, %s65
      %s67 = sphi 0, %s65
      %s68 = sphi 0, %s67
      %s82 = sphi 0, %s68
      %s86 = sphi 0, %s86
      %s88 = sphi 0, %s86
      %s89 = sphi 0, %s88
      %s103 = sphi 0, %s89
      %s109 = sphi 0, %s111
      %s112 = sphi 0, %s109
      %s113 = sphi 0, %s112
      %s129 = sphi 0, %s113
      %s135 = sphi 0, %s137
      %s138 = sphi 0, %s135
      %s139 = sphi 0, %s138
      %s155 = sphi 0, %s139
      %s161 = sphi 0, %s163
      %s164 = sphi 0, %s161
      %s165 = sphi 0, %s164
      %s181 = sphi 0, %s165
      %s187 = sphi 0, %s189
      %s190 = sphi 0, %s187
      %s191 = sphi 0, %s190
      %s207 = sphi 0, %s191
    $region4: #{tpu_custom_call.1} parent=1 // loop_header_branch
      %22 = sbr.rel (%p20) target = $region8
    $region5: #{tpu_custom_call.1} parent=1 // loop_body
      %s24 = ssub.s32 %s19, 1
      %s25 = ssub.s32 %s19, 2
      %s32 = sadd.s32 1, %s27
      %p33 = scmp.ge.s32.totalorder %s32, 1
      %s34 = scalar_select %p33, 0, %s32
      %s35 = sadd.s32 1, %s26
      %s36 = scalar_select %p33, %s35, %s26
      %p37 = scmp.ge.s32.totalorder %s36, 2
      %s38 = scalar_select %p37, 0, %s36
      %s39 = ssub.s32 %s26, %s38
      %p40 = scmp.eq.s32.totalorder %s39, 0
      %s42 = sadd.s32 %s41, 1
      %s43 = scalar_select %p40, %s41, %s42
      %p46 = pneg %p40
      %p47 = scmp.eq.s32.totalorder %s19, 1
      %p48 = por %p46, %p47
      %p49 = scmp.ne.s32.totalorder %s41, %s44
      %p50 = scmp.eq.s32.totalorder %s19, 0
      %p51 = por %p49, %p50
      %p52 = scmp.ne.s32.totalorder %s41, %s44
      %p53 = scmp.eq.s32.totalorder %s24, 1
      %p54 = por %p52, %p53
      %p55 = scmp.ne.s32.totalorder %s44, %s45
      %p56 = scmp.eq.s32.totalorder %s24, 0
      %p57 = por %p55, %p56
      %p58 = scmp.ne.s32.totalorder %s44, %s45
      %p59 = scmp.eq.s32.totalorder %s25, 1
      %p60 = por %p58, %p59
      %p62 = scmp.ne.s32.totalorder %s45, %s61
      %p63 = scmp.eq.s32.totalorder %s25, 0
      %p64 = por %p62, %p63
      %s66 = sadd.s32 %s65, 1
      %p69 = scmp.eq.s32.totalorder %s19, 1
      %p70 = scmp.ne.s32.totalorder %s65, %s67
      %p71 = scmp.eq.s32.totalorder %s19, 0
      %p72 = por %p70, %p71
      %p73 = scmp.ne.s32.totalorder %s65, %s67
      %p74 = scmp.eq.s32.totalorder %s24, 1
      %p75 = por %p73, %p74
      %p76 = scmp.ne.s32.totalorder %s67, %s68
      %p77 = scmp.eq.s32.totalorder %s24, 0
      %p78 = por %p76, %p77
      %p79 = scmp.ne.s32.totalorder %s67, %s68
      %p80 = scmp.eq.s32.totalorder %s25, 1
      %p81 = por %p79, %p80
      %p83 = scmp.ne.s32.totalorder %s68, %s82
      %p84 = scmp.eq.s32.totalorder %s25, 0
      %p85 = por %p83, %p84
      %s87 = sadd.s32 %s86, 1
      %p90 = scmp.eq.s32.totalorder %s19, 1
      %p91 = scmp.ne.s32.totalorder %s86, %s88
      %p92 = scmp.eq.s32.totalorder %s19, 0
      %p93 = por %p91, %p92
      %p94 = scmp.ne.s32.totalorder %s86, %s88
      %p95 = scmp.eq.s32.totalorder %s24, 1
      %p96 = por %p94, %p95
      %p97 = scmp.ne.s32.totalorder %s88, %s89
      %p98 = scmp.eq.s32.totalorder %s24, 0
      %p99 = por %p97, %p98
      %p100 = scmp.ne.s32.totalorder %s88, %s89
      %p101 = scmp.eq.s32.totalorder %s25, 1
      %p102 = por %p100, %p101
      %p104 = scmp.ne.s32.totalorder %s89, %s103
      %p105 = scmp.eq.s32.totalorder %s25, 0
      %p106 = por %p104, %p105
      %s107 = ssub.s32 %s27, %s34
      %p108 = scmp.eq.s32.totalorder %s107, 0
      %s110 = sadd.s32 %s109, 1
      %s111 = scalar_select %p108, %s109, %s110
      %p114 = pneg %p108
      %p115 = scmp.eq.s32.totalorder %s19, 1
      %p116 = por %p114, %p115
      %p117 = scmp.ne.s32.totalorder %s109, %s112
      %p118 = scmp.eq.s32.totalorder %s19, 0
      %p119 = por %p117, %p118
      %p120 = scmp.ne.s32.totalorder %s109, %s112
      %p121 = scmp.eq.s32.totalorder %s24, 1
      %p122 = por %p120, %p121
      %p123 = scmp.ne.s32.totalorder %s112, %s113
      %p124 = scmp.eq.s32.totalorder %s24, 0
      %p125 = por %p123, %p124
      %p126 = scmp.ne.s32.totalorder %s112, %s113
      %p127 = scmp.eq.s32.totalorder %s25, 1
      %p128 = por %p126, %p127
      %p130 = scmp.ne.s32.totalorder %s113, %s129
      %p131 = scmp.eq.s32.totalorder %s25, 0
      %p132 = por %p130, %p131
      %s133 = ssub.s32 %s27, %s34
      %p134 = scmp.eq.s32.totalorder %s133, 0
      %s136 = sadd.s32 %s135, 1
      %s137 = scalar_select %p134, %s135, %s136
      %p140 = pneg %p134
      %p141 = scmp.eq.s32.totalorder %s19, 1
      %p142 = por %p140, %p141
      %p143 = scmp.ne.s32.totalorder %s135, %s138
      %p144 = scmp.eq.s32.totalorder %s19, 0
      %p145 = por %p143, %p144
      %p146 = scmp.ne.s32.totalorder %s135, %s138
      %p147 = scmp.eq.s32.totalorder %s24, 1
      %p148 = por %p146, %p147
      %p149 = scmp.ne.s32.totalorder %s138, %s139
      %p150 = scmp.eq.s32.totalorder %s24, 0
      %p151 = por %p149, %p150
      %p152 = scmp.ne.s32.totalorder %s138, %s139
      %p153 = scmp.eq.s32.totalorder %s25, 1
      %p154 = por %p152, %p153
      %p156 = scmp.ne.s32.totalorder %s139, %s155
      %p157 = scmp.eq.s32.totalorder %s25, 0
      %p158 = por %p156, %p157
      %s159 = ssub.s32 %s26, %s38
      %p160 = scmp.eq.s32.totalorder %s159, 0
      %s162 = sadd.s32 %s161, 1
      %s163 = scalar_select %p160, %s161, %s162
      %p166 = pneg %p160
      %p167 = scmp.eq.s32.totalorder %s19, 1
      %p168 = por %p166, %p167
      %p169 = scmp.ne.s32.totalorder %s161, %s164
      %p170 = scmp.eq.s32.totalorder %s19, 0
      %p171 = por %p169, %p170
      %p172 = scmp.ne.s32.totalorder %s161, %s164
      %p173 = scmp.eq.s32.totalorder %s24, 1
      %p174 = por %p172, %p173
      %p175 = scmp.ne.s32.totalorder %s164, %s165
      %p176 = scmp.eq.s32.totalorder %s24, 0
      %p177 = por %p175, %p176
      %p178 = scmp.ne.s32.totalorder %s164, %s165
      %p179 = scmp.eq.s32.totalorder %s25, 1
      %p180 = por %p178, %p179
      %p182 = scmp.ne.s32.totalorder %s165, %s181
      %p183 = scmp.eq.s32.totalorder %s25, 0
      %p184 = por %p182, %p183
      %s185 = ssub.s32 %s26, %s38
      %p186 = scmp.eq.s32.totalorder %s185, 0
      %s188 = sadd.s32 %s187, 1
      %s189 = scalar_select %p186, %s187, %s188
      %p192 = pneg %p186
      %p193 = scmp.eq.s32.totalorder %s19, 1
      %p194 = por %p192, %p193
      %p195 = scmp.ne.s32.totalorder %s187, %s190
      %p196 = scmp.eq.s32.totalorder %s19, 0
      %p197 = por %p195, %p196
      %p198 = scmp.ne.s32.totalorder %s187, %s190
      %p199 = scmp.eq.s32.totalorder %s24, 1
      %p200 = por %p198, %p199
      %p201 = scmp.ne.s32.totalorder %s190, %s191
      %p202 = scmp.eq.s32.totalorder %s24, 0
      %p203 = por %p201, %p202
      %p204 = scmp.ne.s32.totalorder %s190, %s191
      %p205 = scmp.eq.s32.totalorder %s25, 1
      %p206 = por %p204, %p205
      %p208 = scmp.ne.s32.totalorder %s191, %s207
      %p209 = scmp.eq.s32.totalorder %s25, 0
      %p210 = por %p208, %p209
      %p211 = scmp.le.s32.totalorder 1, %s19
      %p212 = scmp.lt.s32.totalorder %s19, 3
      %p213 = pnand %p211, %p212
      %p214 = pneg %p213
      // Predicated region
      $region9: #{tpu_custom_call.1} parent=5 // pred_check
        _
      $region10: #{tpu_custom_call.1} parent=5 // pred_check_branch
        %216 = sbr.rel (%p213) target = $region12
      $region11: #{tpu_custom_call.1} parent=5 // pred_region
        %s217 = ssub.s32 %s19, 1
        // Predicated region
        $region13: #{tpu_custom_call.1} parent=11 // pred_check
          %p218 = pneg %p78
        $region14: #{tpu_custom_call.1} parent=11 // pred_check_branch
          %220 = sbr.rel (%p218) target = $region16
        $region15: #{tpu_custom_call.1} parent=11 // pred_region
          _
        $region16: #{tpu_custom_call.1} parent=11 // pred_fallthru
          _
        // Predicated region
        $region17: #{tpu_custom_call.1} parent=11 // pred_check
          %p221 = pneg %p99
        $region18: #{tpu_custom_call.1} parent=11 // pred_check_branch
          %223 = sbr.rel (%p221) target = $region20
        $region19: #{tpu_custom_call.1} parent=11 // pred_region
          _
        $region20: #{tpu_custom_call.1} parent=11 // pred_fallthru
          _
        // Predicated region
        $region21: #{tpu_custom_call.1} parent=11 // pred_check
          %p224 = pneg %p125
        $region22: #{tpu_custom_call.1} parent=11 // pred_check_branch
          %226 = sbr.rel (%p224) target = $region24
        $region23: #{tpu_custom_call.1} parent=11 // pred_region
          %s227 = smul.u32 8, %s29
          %p228 = scmp.lt.s32.totalorder %s227, 7
          %s229 = scalar_select %p228, %s227, 7
          %s230 = smul.addr %s229, 8
          %s231 = scalar_lea.vmem %s3, %s230
          %s232 = smul.u32 8, %s29
        $region24: #{tpu_custom_call.1} parent=11 // pred_fallthru
          _
        // Predicated region
        $region25: #{tpu_custom_call.1} parent=11 // pred_check
          %p233 = pneg %p151
        $region26: #{tpu_custom_call.1} parent=11 // pred_check_branch
          %235 = sbr.rel (%p233) target = $region28
        $region27: #{tpu_custom_call.1} parent=11 // pred_region
          %s236 = smul.u32 8, %s29
          %p237 = scmp.lt.s32.totalorder %s236, 7
          %s238 = scalar_select %p237, %s236, 7
          %s239 = smul.addr %s238, 8
          %s240 = scalar_lea.vmem %s4, %s239
          %s241 = smul.u32 8, %s29
        $region28: #{tpu_custom_call.1} parent=11 // pred_fallthru
          _
      $region12: #{tpu_custom_call.1} parent=5 // pred_fallthru
        _
      %p242 = scmp.lt.s32.totalorder %s19, 2
      // Predicated region
      $region29: #{tpu_custom_call.1} parent=5 // pred_check
        %p243 = pneg %p242
      $region30: #{tpu_custom_call.1} parent=5 // pred_check_branch
        %245 = sbr.rel (%p243) target = $region32
      $region31: #{tpu_custom_call.1} parent=5 // pred_region
        // Predicated region
        $region33: #{tpu_custom_call.1} parent=31 // pred_check
          %p246 = pneg %p51
        $region34: #{tpu_custom_call.1} parent=31 // pred_check_branch
          %248 = sbr.rel (%p246) target = $region36
        $region35: #{tpu_custom_call.1} parent=31 // pred_region
          %s249 = smul.u32 2, %s26
          %p250 = scmp.lt.s32.totalorder %s249, 3
          %s251 = scalar_select %p250, %s249, 3
          %s252 = smul.addr %s251, 4
          %s253 = scalar_lea.vmem %s0, %s252
          %s254 = smul.u32 2, %s26
        $region36: #{tpu_custom_call.1} parent=31 // pred_fallthru
          _
      $region32: #{tpu_custom_call.1} parent=5 // pred_fallthru
        _
      %p255 = scmp.le.s32.totalorder 1, %s19
      %p256 = scmp.lt.s32.totalorder %s19, 3
      %p257 = pnand %p255, %p256
      %p258 = pneg %p257
      // Predicated region
      $region37: #{tpu_custom_call.1} parent=5 // pred_check
        _
      $region38: #{tpu_custom_call.1} parent=5 // pred_check_branch
        %260 = sbr.rel (%p257) target = $region40
      $region39: #{tpu_custom_call.1} parent=5 // pred_region
        %s261 = ssub.s32 %s19, 1
        %s262 = smul.u32 2, %s28
        %p263 = scmp.lt.s32.totalorder %s262, 3
        %s264 = scalar_select %p263, %s262, 3
        %s265 = smul.addr %s264, 4
        %s266 = scalar_lea.vmem %s0, %s265
        %p267 = pneg %p57
        %p268 = pneg %p54
        %p269 = pneg %p78
        %p270 = pneg %p75
        %p271 = pneg %p99
        %p272 = pneg %p96
        %s273 = smul.u32 8, %s29
        %p274 = scmp.lt.s32.totalorder %s273, 7
        %s275 = scalar_select %p274, %s273, 7
        %s276 = smul.addr %s275, 8
        %s277 = scalar_lea.vmem %s3, %s276
        %p278 = pneg %p125
        %p279 = pneg %p122
        %s280 = smul.u32 8, %s29
        %p281 = scmp.lt.s32.totalorder %s280, 7
        %s282 = scalar_select %p281, %s280, 7
        %s283 = smul.addr %s282, 8
        %s284 = scalar_lea.vmem %s4, %s283
        %p285 = pneg %p151
        %p286 = pneg %p148
        %p287 = pneg %p177
        %p288 = pneg %p174
        %s289 = sand.u32 %s164, 1
        %s290 = scalar_lea.sflag [#allocation6], %s289
        %s291 = sand.u32 %s164, 1
        %s292 = smul.addr %s291, 2
        %s293 = scalar_lea.vmem [#allocation5], %s292
        %p294 = pneg %p203
        %p295 = pneg %p200
        %s296 = sand.u32 %s190, 1
        %s297 = scalar_lea.sflag [#allocation8], %s296
        %s298 = sand.u32 %s190, 1
        %s299 = smul.addr %s298, 2
        %s300 = scalar_lea.vmem [#allocation7], %s299
        %s301 = smul.u32 2, %s28
        %p302 = scmp.lt.s32.totalorder %s301, 3
        %s303 = scalar_select %p302, %s301, 3
        %s304 = smul.addr %s303, 4
        %s305 = scalar_lea.vmem %s0, %s304
        %s306 = smul.u32 2, %s28
        %s307 = smul.u32 8, %s29
        %p308 = scmp.lt.s32.totalorder %s307, 7
        %s309 = scalar_select %p308, %s307, 7
        %s310 = smul.addr %s309, 8
        %s311 = scalar_lea.vmem %s3, %s310
        %s312 = smul.u32 8, %s29
        %s313 = smul.u32 8, %s29
        %p314 = scmp.lt.s32.totalorder %s313, 7
        %s315 = scalar_select %p314, %s313, 7
        %s316 = smul.addr %s315, 8
        %s317 = scalar_lea.vmem %s4, %s316
        %s318 = smul.u32 8, %s29
        %p319 = scmp.eq.s32.totalorder %s29, 0
        // Predicated region
        $region41: #{tpu_custom_call.1} parent=39 // pred_check
          %p320 = pneg %p319
        $region42: #{tpu_custom_call.1} parent=39 // pred_check_branch
          %322 = sbr.rel (%p320) target = $region44
        $region43: #{tpu_custom_call.1} parent=39 // pred_region
          %v323 = vld [vmem:[%s305] sm:$0xff]
          %v324 = vld [vmem:[%s1] sm:$0xff]
          %v325 = vld [vmem:[%s1 + $0x8] sm:$0xff]
          %v326 = vld [vmem:[%s1 + $0x10] sm:$0xff]
          %v327 = vld [vmem:[%s1 + $0x18] sm:$0xff]
          %v328 = vld [vmem:[%s2] sm:$0xff]
          %v329 = vld [vmem:[%s2 + $0x8] sm:$0xff]
          %v330 = vld [vmem:[%s2 + $0x10] sm:$0xff]
          %v331 = vld [vmem:[%s2 + $0x18] sm:$0xff]
          %333 = vset.pattern.permute.xlu0 0
          %334 = vperm.xlu0 %333, %v328
          %v335 = vpop.permute.xlu0 %334
          %338 = vset.pattern.permute.xlu0 0
          %339 = vperm.xlu0 %338, %v329
          %v340 = vpop.permute.xlu0 %339
          %343 = vset.pattern.permute.xlu0 0
          %344 = vperm.xlu0 %343, %v330
          %v345 = vpop.permute.xlu0 %344
          %348 = vset.pattern.permute.xlu0 0
          %349 = vperm.xlu0 %348, %v331
          %v350 = vpop.permute.xlu0 %349
          %v353 = vcombine.high %v323, %v323
          %vm354 = vcmask 31744
          %v356 = vsel %vm354, %v324, 0
          %v359 = vsel %vm354, %v325, 0
          %v362 = vsel %vm354, %v326, 0
          %v365 = vsel %vm354, %v327, 0
          %vm367 = vcmask 1043456
          %v368 = vsel %vm367, %v323, 0
          %v370 = vsel %vm367, %v353, 0
          %372 = vmatprep.subr.mxu0 0.0
          %373 = vmatpush1.msra.mxu0 0.0
          %374 = vmatprep.subr.mxu0 0.0
          %375 = vmatpush1.msra.mxu0 0.0
          %376 = vmatprep.subr.mxu0 0.0
          %377 = vmatpush1.msra.mxu0 0.0
          %378 = vmatprep.subr.mxu0 0.0
          %379 = vmatpush1.msra.mxu0 0.0
          %380 = vmatprep.subr.mxu0 0.0
          %381 = vmatpush1.msra.mxu0 0.0
          %382 = vmatprep.subr.mxu0 0.0
          %383 = vmatpush1.msra.mxu0 0.0
          %384 = vmatprep.subr.mxu0 0.0
          %385 = vmatpush1.msra.mxu0 0.0
          %386 = vmatprep.subr.mxu0 0.0
          %387 = vmatpush1.msra.mxu0 0.0
          %388 = vmatprep.subr.mxu0 0.0
          %389 = vmatpush1.msra.mxu0 0.0
          %390 = vmatprep.subr.mxu0 0.0
          %391 = vmatpush1.msra.mxu0 0.0
          %392 = vmatprep.subr.mxu0 0.0
          %393 = vmatpush1.msra.mxu0 0.0
          %394 = vmatprep.subr.mxu0 0.0
          %395 = vmatpush1.msra.mxu0 0.0
          %396 = vmatprep.subr.mxu0 0.0
          %397 = vmatpush1.msra.mxu0 0.0
          %398 = vmatprep.subr.mxu0 0.0
          %399 = vmatpush1.msra.mxu0 0.0
          %400 = vmatprep.subr.mxu0 0.0
          %401 = vmatpush1.msra.mxu0 0.0
          %402 = vmatprep.subr.mxu0 %v370
          %403 = vmatpush1.msra.mxu0 %v368
          %404 = vmatprep.subr.mxu0 0.0
          %405 = vmatpush2.msra.mxu0 0.0
          %406 = vmatprep.subr.mxu0 0.0
          %407 = vmatpush2.msra.mxu0 0.0
          %408 = vmatprep.subr.mxu0 0.0
          %409 = vmatpush2.msra.mxu0 0.0
          %410 = vmatprep.subr.mxu0 0.0
          %411 = vmatpush2.msra.mxu0 0.0
          %412 = vmatprep.subr.mxu0 0.0
          %413 = vmatpush2.msra.mxu0 0.0
          %414 = vmatprep.subr.mxu0 0.0
          %415 = vmatpush2.msra.mxu0 0.0
          %416 = vmatprep.subr.mxu0 0.0
          %417 = vmatpush2.msra.mxu0 0.0
          %418 = vmatprep.subr.mxu0 0.0
          %419 = vmatpush2.msra.mxu0 0.0
          %420 = vmatprep.subr.mxu0 0.0
          %421 = vmatpush2.msra.mxu0 0.0
          %422 = vmatprep.subr.mxu0 0.0
          %423 = vmatpush2.msra.mxu0 0.0
          %424 = vmatprep.subr.mxu0 0.0
          %425 = vmatpush2.msra.mxu0 0.0
          %426 = vmatprep.subr.mxu0 0.0
          %427 = vmatpush2.msra.mxu0 0.0
          %428 = vmatprep.subr.mxu0 0.0
          %429 = vmatpush2.msra.mxu0 0.0
          %430 = vmatprep.subr.mxu0 0.0
          %431 = vmatpush2.msra.mxu0 0.0
          %432 = vmatprep.subr.mxu0 0.0
          %433 = vmatpush2.msra.mxu0 0.0
          %434 = vmatprep.subr.mxu0 0.0
          %435 = vmatpush2.msra.mxu0 0.0
          %436 = vmatprep.mubr.f32.mxu0 0.0
          %437 = vmatmul.mubr.f32.gmra.mxu0 %v356
          %v438 = vpop.f32.mrf.mxu0
          %v439 = vadd.f32 %v335, %v438
          %v440 = vpop.f32.mrf.mxu0
          %v441 = vadd.f32 %v335, %v440
          %442 = vmatprep.mubr.f32.mxu0 0.0
          %443 = vmatmul.mubr.f32.gmra.mxu0 %v359
          %v444 = vpop.f32.mrf.mxu0
          %v445 = vadd.f32 %v340, %v444
          %v446 = vpop.f32.mrf.mxu0
          %v447 = vadd.f32 %v340, %v446
          %448 = vmatprep.mubr.f32.mxu0 0.0
          %449 = vmatmul.mubr.f32.gmra.mxu0 %v362
          %v450 = vpop.f32.mrf.mxu0
          %v451 = vadd.f32 %v345, %v450
          %v452 = vpop.f32.mrf.mxu0
          %v453 = vadd.f32 %v345, %v452
          %454 = vmatprep.mubr.f32.mxu0 0.0
          %455 = vmatmul.mubr.f32.gmra.mxu0 %v365
          %v456 = vpop.f32.mrf.mxu0
          %v457 = vadd.f32 %v350, %v456
          %v458 = vpop.f32.mrf.mxu0
          %v459 = vadd.f32 %v350, %v458
          %460 = vdwg.mxu0
          %461 = vst [vmem:[#allocation2] sm:$0xff] %v439
          %462 = vst [vmem:[#allocation2 + $0x8] sm:$0xff] %v441
          %463 = vst [vmem:[#allocation2 + $0x10] sm:$0xff] %v445
          %464 = vst [vmem:[#allocation2 + $0x18] sm:$0xff] %v447
          %465 = vst [vmem:[#allocation2 + $0x20] sm:$0xff] %v451
          %466 = vst [vmem:[#allocation2 + $0x28] sm:$0xff] %v453
          %467 = vst [vmem:[#allocation2 + $0x30] sm:$0xff] %v457
          %468 = vst [vmem:[#allocation2 + $0x38] sm:$0xff] %v459
          %v469 = vlaneseq
          %vm470 = vcmp.ge.s32.totalorder %v469, 0
          %vm471 = vcmp.lt.s32.totalorder %v469, 256
          %vm472 = vmand %vm470, %vm471
          %473 = vst.msk [vmem:[#allocation3] sm:$0x3] %vm472, inf
          %474 = vst.msk [vmem:[#allocation4] sm:$0x3] %vm472, 0
        $region44: #{tpu_custom_call.1} parent=39 // pred_fallthru
          _
        %v475 = vld [vmem:[#allocation2] sm:$0xff]
        %v476 = vld [vmem:[#allocation2 + $0x8] sm:$0xff]
        %v477 = vld [vmem:[#allocation2 + $0x10] sm:$0xff]
        %v478 = vld [vmem:[#allocation2 + $0x18] sm:$0xff]
        %v479 = vld [vmem:[#allocation2 + $0x20] sm:$0xff]
        %v480 = vld [vmem:[#allocation2 + $0x28] sm:$0xff]
        %v481 = vld [vmem:[#allocation2 + $0x30] sm:$0xff]
        %v482 = vld [vmem:[#allocation2 + $0x38] sm:$0xff]
        %v483 = vld [vmem:[%s311] sm:$0xff]
        %v484 = vld [vmem:[%s311 + $0x8] sm:$0xff]
        %v485 = vld [vmem:[%s311 + $0x10] sm:$0xff]
        %v486 = vld [vmem:[%s311 + $0x18] sm:$0xff]
        %v487 = vld [vmem:[%s311 + $0x20] sm:$0xff]
        %v488 = vld [vmem:[%s311 + $0x28] sm:$0xff]
        %v489 = vld [vmem:[%s311 + $0x30] sm:$0xff]
        %v490 = vld [vmem:[%s311 + $0x38] sm:$0xff]
        %vm491 = vcmask 261120
        %v493 = vsel %vm491, %v483, 0
        %v496 = vsel %vm491, %v484, 0
        %v499 = vsel %vm491, %v485, 0
        %v502 = vsel %vm491, %v486, 0
        %v505 = vsel %vm491, %v487, 0
        %v508 = vsel %vm491, %v488, 0
        %v511 = vsel %vm491, %v489, 0
        %v514 = vsel %vm491, %v490, 0
        %516 = vmatprep.subr.mxu0 0.0
        %517 = vmatpush1.msra.mxu0 0.0
        %518 = vmatprep.subr.mxu0 0.0
        %519 = vmatpush1.msra.mxu0 0.0
        %520 = vmatprep.subr.mxu0 0.0
        %521 = vmatpush1.msra.mxu0 0.0
        %522 = vmatprep.subr.mxu0 0.0
        %523 = vmatpush1.msra.mxu0 0.0
        %524 = vmatprep.subr.mxu0 0.0
        %525 = vmatpush1.msra.mxu0 0.0
        %526 = vmatprep.subr.mxu0 0.0
        %527 = vmatpush1.msra.mxu0 0.0
        %528 = vmatprep.subr.mxu0 0.0
        %529 = vmatpush1.msra.mxu0 0.0
        %530 = vmatprep.subr.mxu0 0.0
        %531 = vmatpush1.msra.mxu0 0.0
        %532 = vmatprep.subr.mxu0 0.0
        %533 = vmatpush1.msra.mxu0 0.0
        %534 = vmatprep.subr.mxu0 0.0
        %535 = vmatpush1.msra.mxu0 0.0
        %536 = vmatprep.subr.mxu0 0.0
        %537 = vmatpush1.msra.mxu0 0.0
        %538 = vmatprep.subr.mxu0 0.0
        %539 = vmatpush1.msra.mxu0 0.0
        %540 = vmatprep.subr.mxu0 %v482
        %541 = vmatpush1.msra.mxu0 %v481
        %542 = vmatprep.subr.mxu0 %v480
        %543 = vmatpush1.msra.mxu0 %v479
        %544 = vmatprep.subr.mxu0 %v478
        %545 = vmatpush1.msra.mxu0 %v477
        %546 = vmatprep.subr.mxu0 %v476
        %547 = vmatpush1.msra.mxu0 %v475
        %548 = vmatprep.subr.mxu0 0.0
        %549 = vmatpush2.msra.mxu0 0.0
        %550 = vmatprep.subr.mxu0 0.0
        %551 = vmatpush2.msra.mxu0 0.0
        %552 = vmatprep.subr.mxu0 0.0
        %553 = vmatpush2.msra.mxu0 0.0
        %554 = vmatprep.subr.mxu0 0.0
        %555 = vmatpush2.msra.mxu0 0.0
        %556 = vmatprep.subr.mxu0 0.0
        %557 = vmatpush2.msra.mxu0 0.0
        %558 = vmatprep.subr.mxu0 0.0
        %559 = vmatpush2.msra.mxu0 0.0
        %560 = vmatprep.subr.mxu0 0.0
        %561 = vmatpush2.msra.mxu0 0.0
        %562 = vmatprep.subr.mxu0 0.0
        %563 = vmatpush2.msra.mxu0 0.0
        %564 = vmatprep.subr.mxu0 0.0
        %565 = vmatpush2.msra.mxu0 0.0
        %566 = vmatprep.subr.mxu0 0.0
        %567 = vmatpush2.msra.mxu0 0.0
        %568 = vmatprep.subr.mxu0 0.0
        %569 = vmatpush2.msra.mxu0 0.0
        %570 = vmatprep.subr.mxu0 0.0
        %571 = vmatpush2.msra.mxu0 0.0
        %572 = vmatprep.subr.mxu0 0.0
        %573 = vmatpush2.msra.mxu0 0.0
        %574 = vmatprep.subr.mxu0 0.0
        %575 = vmatpush2.msra.mxu0 0.0
        %576 = vmatprep.subr.mxu0 0.0
        %577 = vmatpush2.msra.mxu0 0.0
        %578 = vmatprep.subr.mxu0 0.0
        %579 = vmatpush2.msra.mxu0 0.0
        %580 = vmatprep.mubr.f32.mxu0 0.0
        %581 = vmatmul.mubr.f32.gmra.mxu0 %v493
        %v582 = vpop.f32.mrf.mxu0
        %v583 = vadd.f32 0.0, %v582
        %v584 = vpop.f32.mrf.mxu0
        %v585 = vadd.f32 0.0, %v584
        %586 = vmatprep.mubr.f32.mxu0 0.0
        %587 = vmatmul.mubr.f32.gmra.mxu0 %v496
        %v588 = vpop.f32.mrf.mxu0
        %v589 = vadd.f32 0.0, %v588
        %v590 = vpop.f32.mrf.mxu0
        %v591 = vadd.f32 0.0, %v590
        %592 = vmatprep.mubr.f32.mxu0 0.0
        %593 = vmatmul.mubr.f32.gmra.mxu0 %v499
        %v594 = vpop.f32.mrf.mxu0
        %v595 = vadd.f32 0.0, %v594
        %v596 = vpop.f32.mrf.mxu0
        %v597 = vadd.f32 0.0, %v596
        %598 = vmatprep.mubr.f32.mxu0 0.0
        %599 = vmatmul.mubr.f32.gmra.mxu0 %v502
        %v600 = vpop.f32.mrf.mxu0
        %v601 = vadd.f32 0.0, %v600
        %v602 = vpop.f32.mrf.mxu0
        %v603 = vadd.f32 0.0, %v602
        %604 = vmatprep.mubr.f32.mxu0 0.0
        %605 = vmatmul.mubr.f32.gmra.mxu0 %v505
        %v606 = vpop.f32.mrf.mxu0
        %v607 = vadd.f32 0.0, %v606
        %v608 = vpop.f32.mrf.mxu0
        %v609 = vadd.f32 0.0, %v608
        %610 = vmatprep.mubr.f32.mxu0 0.0
        %611 = vmatmul.mubr.f32.gmra.mxu0 %v508
        %v612 = vpop.f32.mrf.mxu0
        %v613 = vadd.f32 0.0, %v612
        %v614 = vpop.f32.mrf.mxu0
        %v615 = vadd.f32 0.0, %v614
        %616 = vmatprep.mubr.f32.mxu0 0.0
        %617 = vmatmul.mubr.f32.gmra.mxu0 %v511
        %v618 = vpop.f32.mrf.mxu0
        %v619 = vadd.f32 0.0, %v618
        %v620 = vpop.f32.mrf.mxu0
        %v621 = vadd.f32 0.0, %v620
        %622 = vmatprep.mubr.f32.mxu0 0.0
        %623 = vmatmul.mubr.f32.gmra.mxu0 %v514
        %v624 = vpop.f32.mrf.mxu0
        %v625 = vadd.f32 0.0, %v624
        %v626 = vpop.f32.mrf.mxu0
        %v627 = vadd.f32 0.0, %v626
        %628 = vdwg.mxu0
        %v629 = vld [vmem:[%s317] sm:$0xff]
        %v630 = vld [vmem:[%s317 + $0x8] sm:$0xff]
        %v631 = vld [vmem:[%s317 + $0x10] sm:$0xff]
        %v632 = vld [vmem:[%s317 + $0x18] sm:$0xff]
        %v633 = vld [vmem:[%s317 + $0x20] sm:$0xff]
        %v634 = vld [vmem:[%s317 + $0x28] sm:$0xff]
        %v635 = vld [vmem:[%s317 + $0x30] sm:$0xff]
        %v636 = vld [vmem:[%s317 + $0x38] sm:$0xff]
        %v637 = vmul.f32 %v583, 2.0
        %v638 = vmul.f32 %v585, 2.0
        %v639 = vmul.f32 %v589, 2.0
        %v640 = vmul.f32 %v591, 2.0
        %v641 = vmul.f32 %v595, 2.0
        %v642 = vmul.f32 %v597, 2.0
        %v643 = vmul.f32 %v601, 2.0
        %v644 = vmul.f32 %v603, 2.0
        %v645 = vmul.f32 %v607, 2.0
        %v646 = vmul.f32 %v609, 2.0
        %v647 = vmul.f32 %v613, 2.0
        %v648 = vmul.f32 %v615, 2.0
        %v649 = vmul.f32 %v619, 2.0
        %v650 = vmul.f32 %v621, 2.0
        %v651 = vmul.f32 %v625, 2.0
        %v652 = vmul.f32 %v627, 2.0
        %654 = vset.pattern.permute.xlu0 0
        %655 = vperm.xlu0 %654, %v629
        %v656 = vpop.permute.xlu0 %655
        %659 = vset.pattern.permute.xlu0 0
        %660 = vperm.xlu0 %659, %v630
        %v661 = vpop.permute.xlu0 %660
        %664 = vset.pattern.permute.xlu0 0
        %665 = vperm.xlu0 %664, %v631
        %v666 = vpop.permute.xlu0 %665
        %669 = vset.pattern.permute.xlu0 0
        %670 = vperm.xlu0 %669, %v632
        %v671 = vpop.permute.xlu0 %670
        %674 = vset.pattern.permute.xlu0 0
        %675 = vperm.xlu0 %674, %v633
        %v676 = vpop.permute.xlu0 %675
        %679 = vset.pattern.permute.xlu0 0
        %680 = vperm.xlu0 %679, %v634
        %v681 = vpop.permute.xlu0 %680
        %684 = vset.pattern.permute.xlu0 0
        %685 = vperm.xlu0 %684, %v635
        %v686 = vpop.permute.xlu0 %685
        %689 = vset.pattern.permute.xlu0 0
        %690 = vperm.xlu0 %689, %v636
        %v691 = vpop.permute.xlu0 %690
        %v693 = vsub.f32 %v656, %v637
        %v694 = vsub.f32 %v656, %v638
        %v695 = vsub.f32 %v661, %v639
        %v696 = vsub.f32 %v661, %v640
        %v697 = vsub.f32 %v666, %v641
        %v698 = vsub.f32 %v666, %v642
        %v699 = vsub.f32 %v671, %v643
        %v700 = vsub.f32 %v671, %v644
        %v701 = vsub.f32 %v676, %v645
        %v702 = vsub.f32 %v676, %v646
        %v703 = vsub.f32 %v681, %v647
        %v704 = vsub.f32 %v681, %v648
        %v705 = vsub.f32 %v686, %v649
        %v706 = vsub.f32 %v686, %v650
        %v707 = vsub.f32 %v691, %v651
        %v708 = vsub.f32 %v691, %v652
        %v709 = vmin.f32 %v693, %v697
        %v710 = vmin.f32 %v695, %v699
        %v711 = vmin.f32 %v709, %v701
        %v712 = vmin.f32 %v710, %v703
        %v713 = vmin.f32 %v711, %v705
        %v714 = vmin.f32 %v712, %v707
        %v715 = vmin.f32 %v713, %v714
        %v716 = vrot.slane %v715, 4
        %v717 = vmin.f32 %v715, %v716
        %v718 = vrot.slane %v717, 2
        %v719 = vmin.f32 %v717, %v718
        %v720 = vrot.slane %v719, 1
        %v721 = vmin.f32 %v719, %v720
        %v722 = vmin.f32 %v694, %v698
        %v723 = vmin.f32 %v696, %v700
        %v724 = vmin.f32 %v722, %v702
        %v725 = vmin.f32 %v723, %v704
        %v726 = vmin.f32 %v724, %v706
        %v727 = vmin.f32 %v725, %v708
        %v728 = vmin.f32 %v726, %v727
        %v729 = vrot.slane %v728, 4
        %v730 = vmin.f32 %v728, %v729
        %v731 = vrot.slane %v730, 2
        %v732 = vmin.f32 %v730, %v731
        %v733 = vrot.slane %v732, 1
        %v734 = vmin.f32 %v732, %v733
        %v735 = vlaneseq
        %v736 = vshrl.u32 %v735, 7
        %v737 = vadd.s32 %v736, 8
        %v738 = vadd.s32 %v736, 16
        %v739 = vadd.s32 %v736, 24
        %v740 = vadd.s32 %v736, 32
        %v741 = vadd.s32 %v736, 40
        %v742 = vadd.s32 %v736, 48
        %v743 = vadd.s32 %v736, 56
        %vm744 = vcmp.eq.f32.partialorder %v693, %v721
        %vm745 = vcmp.eq.f32.partialorder %v694, %v734
        %vm746 = vcmp.eq.f32.partialorder %v695, %v721
        %vm747 = vcmp.eq.f32.partialorder %v696, %v734
        %vm748 = vcmp.eq.f32.partialorder %v697, %v721
        %vm749 = vcmp.eq.f32.partialorder %v698, %v734
        %vm750 = vcmp.eq.f32.partialorder %v699, %v721
        %vm751 = vcmp.eq.f32.partialorder %v700, %v734
        %vm752 = vcmp.eq.f32.partialorder %v701, %v721
        %vm753 = vcmp.eq.f32.partialorder %v702, %v734
        %vm754 = vcmp.eq.f32.partialorder %v703, %v721
        %vm755 = vcmp.eq.f32.partialorder %v704, %v734
        %vm756 = vcmp.eq.f32.partialorder %v705, %v721
        %vm757 = vcmp.eq.f32.partialorder %v706, %v734
        %vm758 = vcmp.eq.f32.partialorder %v707, %v721
        %vm759 = vcmp.eq.f32.partialorder %v708, %v734
        %v760 = vsel %vm744, %v736, 64
        %v761 = vsel %vm745, %v736, 64
        %v762 = vsel %vm746, %v737, 64
        %v763 = vsel %vm747, %v737, 64
        %v764 = vsel %vm748, %v738, 64
        %v765 = vsel %vm749, %v738, 64
        %v766 = vsel %vm750, %v739, 64
        %v767 = vsel %vm751, %v739, 64
        %v768 = vsel %vm752, %v740, 64
        %v769 = vsel %vm753, %v740, 64
        %v770 = vsel %vm754, %v741, 64
        %v771 = vsel %vm755, %v741, 64
        %v772 = vsel %vm756, %v742, 64
        %v773 = vsel %vm757, %v742, 64
        %v774 = vsel %vm758, %v743, 64
        %v775 = vsel %vm759, %v743, 64
        %vm776 = vcmp.lt.s32.totalorder %v760, %v764
        %v777 = vsel %vm776, %v760, %v764
        %vm778 = vcmp.lt.s32.totalorder %v762, %v766
        %v779 = vsel %vm778, %v762, %v766
        %vm780 = vcmp.lt.s32.totalorder %v777, %v768
        %v781 = vsel %vm780, %v777, %v768
        %vm782 = vcmp.lt.s32.totalorder %v779, %v770
        %v783 = vsel %vm782, %v779, %v770
        %vm784 = vcmp.lt.s32.totalorder %v781, %v772
        %v785 = vsel %vm784, %v781, %v772
        %vm786 = vcmp.lt.s32.totalorder %v783, %v774
        %v787 = vsel %vm786, %v783, %v774
        %vm788 = vcmp.lt.s32.totalorder %v785, %v787
        %v789 = vsel %vm788, %v785, %v787
        %v790 = vrot.slane %v789, 4
        %vm791 = vcmp.lt.s32.totalorder %v789, %v790
        %v792 = vsel %vm791, %v789, %v790
        %v793 = vrot.slane %v792, 2
        %vm794 = vcmp.lt.s32.totalorder %v792, %v793
        %v795 = vsel %vm794, %v792, %v793
        %v796 = vrot.slane %v795, 1
        %vm797 = vcmp.lt.s32.totalorder %v795, %v796
        %v798 = vsel %vm797, %v795, %v796
        %vm799 = vcmp.lt.s32.totalorder %v761, %v765
        %v800 = vsel %vm799, %v761, %v765
        %vm801 = vcmp.lt.s32.totalorder %v763, %v767
        %v802 = vsel %vm801, %v763, %v767
        %vm803 = vcmp.lt.s32.totalorder %v800, %v769
        %v804 = vsel %vm803, %v800, %v769
        %vm805 = vcmp.lt.s32.totalorder %v802, %v771
        %v806 = vsel %vm805, %v802, %v771
        %vm807 = vcmp.lt.s32.totalorder %v804, %v773
        %v808 = vsel %vm807, %v804, %v773
        %vm809 = vcmp.lt.s32.totalorder %v806, %v775
        %v810 = vsel %vm809, %v806, %v775
        %vm811 = vcmp.lt.s32.totalorder %v808, %v810
        %v812 = vsel %vm811, %v808, %v810
        %v813 = vrot.slane %v812, 4
        %vm814 = vcmp.lt.s32.totalorder %v812, %v813
        %v815 = vsel %vm814, %v812, %v813
        %v816 = vrot.slane %v815, 2
        %vm817 = vcmp.lt.s32.totalorder %v815, %v816
        %v818 = vsel %vm817, %v815, %v816
        %v819 = vrot.slane %v818, 1
        %vm820 = vcmp.lt.s32.totalorder %v818, %v819
        %v821 = vsel %vm820, %v818, %v819
        %s822 = smul.u32 %s29, 64
        %v823 = vstv %s822
        %v824 = vadd.s32 %v798, %v823
        %v825 = vadd.s32 %v821, %v823
        %v826 = vld [vmem:[#allocation3] sm:$0x3]
        %v828 = vlaneseq
        %v829 = vshrl.u32 %v828, 7
        %v830 = vsub.s32 0, %v829
        %v831 = vrot.slane %v826, %v830
        %v832 = vlaneseq
        %v833 = vshrl.u32 %v832, 7
        %v834 = vsub.s32 1, %v833
        %v835 = vrot.slane %v826, %v834
        %vm838 = vcmp.lt.f32.partialorder %v721, %v831
        %vm839 = vcmp.lt.f32.partialorder %v734, %v835
        %v840 = vsel %vm838, %v721, %v831
        %v841 = vsel %vm839, %v734, %v835
        %v844 = vcombine.low %v840, %v841
        %v846 = vunpack.c.l.s4 1966171168
        %v847 = vunpack.c.0.s8 %v846
        %v848 = vlaneseq
        %v849 = vshrl.u32 %v848, 7
        %v850 = vsub.s32 %v847, %v849
        %v851 = vrot.slane %v844, %v850
        %v853 = vunpack.c.l.s4 1966171168
        %v854 = vunpack.c.0.s8 %v853
        %v855 = vlaneseq
        %v856 = vshrl.u32 %v855, 7
        %v857 = vsub.s32 %v854, %v856
        %v858 = vrot.slane %v851, %v857
        %v860 = vlaneseq
        %vm861 = vcmp.ge.s32.totalorder %v860, 0
        %vm862 = vcmp.lt.s32.totalorder %v860, 256
        %vm863 = vmand %vm861, %vm862
        %864 = vst.msk [vmem:[#allocation3] sm:$0x3] %vm863, %v858
        %v865 = vld [vmem:[#allocation4] sm:$0x3]
        %v866 = vlaneseq
        %v867 = vshrl.u32 %v866, 7
        %v868 = vsub.s32 0, %v867
        %v869 = vrot.slane %v865, %v868
        %v870 = vlaneseq
        %v871 = vshrl.u32 %v870, 7
        %v872 = vsub.s32 1, %v871
        %v873 = vrot.slane %v865, %v872
        %v874 = vsel %vm838, %v824, %v869
        %v875 = vsel %vm839, %v825, %v873
        %v876 = vcombine.low %v874, %v875
        %v878 = vunpack.c.l.s4 1966171168
        %v879 = vunpack.c.0.s8 %v878
        %v880 = vlaneseq
        %v881 = vshrl.u32 %v880, 7
        %v882 = vsub.s32 %v879, %v881
        %v883 = vrot.slane %v876, %v882
        %v885 = vunpack.c.l.s4 1966171168
        %v886 = vunpack.c.0.s8 %v885
        %v887 = vlaneseq
        %v888 = vshrl.u32 %v887, 7
        %v889 = vsub.s32 %v886, %v888
        %v890 = vrot.slane %v883, %v889
        %891 = vst.msk [vmem:[#allocation4] sm:$0x3] %vm863, %v890
        // Predicated region
        $region45: #{tpu_custom_call.1} parent=39 // pred_check
          %p892 = pneg %p319
        $region46: #{tpu_custom_call.1} parent=39 // pred_check_branch
          %894 = sbr.rel (%p892) target = $region48
        $region47: #{tpu_custom_call.1} parent=39 // pred_region
          %v895 = vld [vmem:[#allocation4] sm:$0x3]
          %896 = vst.msk [vmem:[%s293] sm:$0x3] %vm863, %v895
          %v897 = vmul.f32 %v475, %v475
          %v898 = vmul.f32 %v476, %v476
          %v899 = vmul.f32 %v477, %v477
          %v900 = vmul.f32 %v478, %v478
          %v901 = vmul.f32 %v479, %v479
          %v902 = vmul.f32 %v480, %v480
          %v903 = vmul.f32 %v481, %v481
          %v904 = vmul.f32 %v482, %v482
          %v905 = vadd.f32 %v897, %v899
          %v906 = vadd.f32 %v905, %v901
          %v907 = vadd.f32 %v906, %v903
          %v908 = vrot.slane %v907, 4
          %v909 = vadd.f32 %v907, %v908
          %v910 = vrot.slane %v909, 2
          %v911 = vadd.f32 %v909, %v910
          %v912 = vrot.slane %v911, 1
          %v913 = vadd.f32 %v911, %v912
          %v914 = vadd.f32 %v898, %v900
          %v915 = vadd.f32 %v914, %v902
          %v916 = vadd.f32 %v915, %v904
          %v917 = vrot.slane %v916, 4
          %v918 = vadd.f32 %v916, %v917
          %v919 = vrot.slane %v918, 2
          %v920 = vadd.f32 %v918, %v919
          %v921 = vrot.slane %v920, 1
          %v922 = vadd.f32 %v920, %v921
          %v923 = vld [vmem:[#allocation3] sm:$0x3]
          %v926 = vcombine.low %v913, %v922
          %v928 = vunpack.c.l.s4 1966171168
          %v929 = vunpack.c.0.s8 %v928
          %v930 = vlaneseq
          %v931 = vshrl.u32 %v930, 7
          %v932 = vsub.s32 %v929, %v931
          %v933 = vrot.slane %v926, %v932
          %v935 = vunpack.c.l.s4 1966171168
          %v936 = vunpack.c.0.s8 %v935
          %v937 = vlaneseq
          %v938 = vshrl.u32 %v937, 7
          %v939 = vsub.s32 %v936, %v938
          %v940 = vrot.slane %v933, %v939
          %v942 = vadd.f32 %v923, %v940
          %v943 = vlaneseq
          %v944 = vand.u32 %v943, 127
          %v945 = vadd.s32 %v944, 128
          %s946 = smul.u32 %s28, 256
          %v947 = vstv %s946
          %v948 = vadd.s32 %v947, %v944
          %v949 = vadd.s32 %v947, %v945
          %vm950 = vcmp.lt.s32.totalorder %v948, 512
          %vm951 = vcmp.lt.s32.totalorder %v949, 512
          %v953 = vlaneseq
          %v954 = vshrl.u32 %v953, 7
          %v955 = vsub.s32 0, %v954
          %v956 = vrot.slane %v942, %v955
          %v957 = vlaneseq
          %v958 = vshrl.u32 %v957, 7
          %v959 = vsub.s32 1, %v958
          %v960 = vrot.slane %v942, %v959
          %v963 = vsel %vm950, %v956, 0.0
          %v964 = vsel %vm951, %v960, 0.0
          %v967 = vcombine.low %v963, %v964
          %v969 = vunpack.c.l.s4 1966171168
          %v970 = vunpack.c.0.s8 %v969
          %v971 = vlaneseq
          %v972 = vshrl.u32 %v971, 7
          %v973 = vsub.s32 %v970, %v972
          %v974 = vrot.slane %v967, %v973
          %v976 = vunpack.c.l.s4 1966171168
          %v977 = vunpack.c.0.s8 %v976
          %v978 = vlaneseq
          %v979 = vshrl.u32 %v978, 7
          %v980 = vsub.s32 %v977, %v979
          %v981 = vrot.slane %v974, %v980
          %983 = vst.msk [vmem:[%s300] sm:$0x3] %vm863, %v981
        $region48: #{tpu_custom_call.1} parent=39 // pred_fallthru
          _
        %s984 = sand.u32 %s164, 1
        %s985 = scalar_lea.sflag [#allocation6], %s984
        %s986 = sand.u32 %s164, 1
        %s987 = smul.addr %s986, 2
        %s988 = scalar_lea.vmem [#allocation5], %s987
        %s989 = sand.u32 %s190, 1
        %s990 = scalar_lea.sflag [#allocation8], %s989
        %s991 = sand.u32 %s190, 1
        %s992 = smul.addr %s991, 2
        %s993 = scalar_lea.vmem [#allocation7], %s992
        // Predicated region
        $region49: #{tpu_custom_call.1} parent=39 // pred_check
          %p994 = pneg %p174
        $region50: #{tpu_custom_call.1} parent=39 // pred_check_branch
          %996 = sbr.rel (%p994) target = $region52
        $region51: #{tpu_custom_call.1} parent=39 // pred_region
          %s998 = ssub.s32 32, 32
          %999 = vsyncadd %s985, %s998
          %s1000 = smul.addr %s28, 2
          %s1001 = smul.addr %s1000, 16
          %s1002 = scalar_lea.hbm %s5, %s1001
          %s1004 = sshll.u32 %s988, 4
          %s1005 = int_to_ptr.vmem [resolvable:$true] %s1004
          %1007 = dma.vmem_to_hbm [thread:$0]  %s1005, 32, %s1002, %s985
        $region52: #{tpu_custom_call.1} parent=39 // pred_fallthru
          _
        // Predicated region
        $region53: #{tpu_custom_call.1} parent=39 // pred_check
          %p1008 = pneg %p200
        $region54: #{tpu_custom_call.1} parent=39 // pred_check_branch
          %1010 = sbr.rel (%p1008) target = $region56
        $region55: #{tpu_custom_call.1} parent=39 // pred_region
          %s1012 = ssub.s32 32, 32
          %1013 = vsyncadd %s990, %s1012
          %s1014 = smul.addr %s28, 2
          %s1015 = smul.addr %s1014, 16
          %s1016 = scalar_lea.hbm %s6, %s1015
          %s1018 = sshll.u32 %s993, 4
          %s1019 = int_to_ptr.vmem [resolvable:$true] %s1018
          %1021 = dma.vmem_to_hbm [thread:$0]  %s1019, 32, %s1016, %s990
        $region56: #{tpu_custom_call.1} parent=39 // pred_fallthru
          _
      $region40: #{tpu_custom_call.1} parent=5 // pred_fallthru
        _
      %p1022 = scmp.le.s32.totalorder 2, %s19
      // Predicated region
      $region57: #{tpu_custom_call.1} parent=5 // pred_check
        %p1023 = pneg %p1022
      $region58: #{tpu_custom_call.1} parent=5 // pred_check_branch
        %1025 = sbr.rel (%p1023) target = $region60
      $region59: #{tpu_custom_call.1} parent=5 // pred_region
        %s1026 = ssub.s32 %s19, 2
        // Predicated region
        $region61: #{tpu_custom_call.1} parent=59 // pred_check
          %p1027 = pneg %p180
        $region62: #{tpu_custom_call.1} parent=59 // pred_check_branch
          %1029 = sbr.rel (%p1027) target = $region64
        $region63: #{tpu_custom_call.1} parent=59 // pred_region
          %s1030 = sand.u32 %s165, 1
          %s1031 = scalar_lea.sflag [#allocation6], %s1030
          %s1032 = sand.u32 %s165, 1
          %s1033 = smul.addr %s1032, 2
          %s1034 = scalar_lea.vmem [#allocation5], %s1033
          %1035 = dma.done %s1031, 32
        $region64: #{tpu_custom_call.1} parent=59 // pred_fallthru
          _
        // Predicated region
        $region65: #{tpu_custom_call.1} parent=59 // pred_check
          %p1036 = pneg %p206
        $region66: #{tpu_custom_call.1} parent=59 // pred_check_branch
          %1038 = sbr.rel (%p1036) target = $region68
        $region67: #{tpu_custom_call.1} parent=59 // pred_region
          %s1039 = sand.u32 %s191, 1
          %s1040 = scalar_lea.sflag [#allocation8], %s1039
          %s1041 = sand.u32 %s191, 1
          %s1042 = smul.addr %s1041, 2
          %s1043 = scalar_lea.vmem [#allocation7], %s1042
          %1044 = dma.done %s1040, 32
        $region68: #{tpu_custom_call.1} parent=59 // pred_fallthru
          _
      $region60: #{tpu_custom_call.1} parent=5 // pred_fallthru
        _
    $region6: #{tpu_custom_call.1} parent=1 // loop_footer
      %s23 = sadd.s32 1, %s19
    $region7: #{tpu_custom_call.1} parent=1 // loop_footer_branch
      %18 = sbr.rel target = $region3
    $region8: #{tpu_custom_call.1} parent=1 // loop_exit
      _
    %1045 = vsyncpa [#allocation6], 1
    %s1046 = scalar_lea.sflag [#allocation6], 1
    %1047 = vsyncpa %s1046, 1
    %1048 = vsyncpa [#allocation8], 1
    %s1049 = scalar_lea.sflag [#allocation8], 1
    %1050 = vsyncpa %s1049, 1

</llo_original>
